<compile_context>
chip_gen: v6e
topology: v6e:2x2x1
jax: 0.10.0
libtpu: 0.0.40
codegen_flags: <defaults>
</compile_context>

<pallas_src>
import functools

import jax
import jax.numpy as jnp
from jax.experimental import pallas as pl
from jax.experimental.pallas import tpu as pltpu  # noqa: F401  (TPU backend registration)


def _round_up(x, m):
    return ((x + m - 1) // m) * m


# ----------------------------------------------------------------------------
# Kernel
# ----------------------------------------------------------------------------
def _nrnn_kernel(layout, use_layer_norm, inp_ref, h_ref, p_ref, out_ref):
    """One fused forward step.  `layout` holds static row offsets into the param slab."""
    f32 = jnp.float32
    E, H, A = layout["E"], layout["H"], layout["A"]
    W3 = 3 * H
    r_w1, r_b1 = layout["r_w1"], layout["r_b1"]
    r_wi, r_wh = layout["r_wi"], layout["r_wh"]
    r_bg, r_w2, r_b2 = layout["r_bg"], layout["r_w2"], layout["r_b2"]
    GO, GQ = layout["GO"], layout["GQ"]

    # ---- static views into the single parameter slab (free, no extra DMA) ----
    w1 = p_ref[r_w1:r_w1 + E, 0:H]
    b1 = p_ref[r_b1:r_b1 + 1, 0:H]
    w_i = p_ref[r_wi:r_wi + H, 0:W3]
    w_h = p_ref[r_wh:r_wh + H, 0:W3]
    bg = p_ref[r_bg:r_bg + 2, 0:W3]          # row 0 -> gi bias, row 1 -> gh bias
    w2 = p_ref[r_w2:r_w2 + H, 0:A]
    b2 = p_ref[r_b2:r_b2 + 1, 0:A]

    # ---- fc1 + ReLU -----------------------------------------------------------
    x = jnp.dot(inp_ref[...], w1, preferred_element_type=f32) + b1
    x = jnp.maximum(x, 0.0)

    h_in = h_ref[...]

    # ---- GRUCell: two fused 3H-wide projections instead of six matmuls --------
    gi = jnp.dot(x, w_i, preferred_element_type=f32) + bg[0:1, :]
    gh = jnp.dot(h_in, w_h, preferred_element_type=f32) + bg[1:2, :]

    # r = sigmoid(W_ir x + b_ir + W_hr h + b_hr)
    # z = sigmoid(W_iz x + b_iz + W_hz h + b_hz)
    # n = tanh  (W_in x + b_in + r * (W_hn h + b_hn))
    # h' = (1 - z) * n + z * h
    r = jax.nn.sigmoid(gi[:, 0:H] + gh[:, 0:H])
    z = jax.nn.sigmoid(gi[:, H:2 * H] + gh[:, H:2 * H])
    n = jnp.tanh(gi[:, 2 * H:3 * H] + r * gh[:, 2 * H:3 * H])
    hh = (1.0 - z) * n + z * h_in

    # ---- optional LayerNorm (affine already folded into w2/b2) ----------------
    if use_layer_norm:
        mean = jnp.mean(hh, axis=-1, keepdims=True)
        cent = hh - mean
        var = jnp.mean(cent * cent, axis=-1, keepdims=True)
        y = cent * jax.lax.rsqrt(var + 1e-5)
    else:
        y = hh

    # ---- fc2 -------------------------------------------------------------------
    q = jnp.dot(y, w2, preferred_element_type=f32) + b2

    # ---- two unmasked 128-lane-aligned stores into the packed output slab ------
    out_ref[:, 0:GO] = jnp.pad(hh, ((0, 0), (0, GO - H)))
    out_ref[:, GO:GO + GQ] = jnp.pad(q, ((0, 0), (0, GQ - A)))


# ----------------------------------------------------------------------------
# One-time parameter packing (init-time): gate concat, bias folding, LN-affine
# fold into fc2, and assembly of a SINGLE f32 parameter slab.
# ----------------------------------------------------------------------------
def pack_params(params, *, use_layer_norm=False):
    E, H = params["w1"].shape
    A = params["w2"].shape[1]
    W3 = 3 * H
    lanes = max(H, W3, A)

    # LayerNorm affine folded into fc2: fc2(LN(hh)) = hh_norm @ (diag(g) W2) + (b @ W2 + b2)
    if use_layer_norm:
        w2 = params["ln_g"].T * params["w2"]
        b2 = params["b2"] + params["ln_b"] @ params["w2"]
    else:
        w2 = params["w2"]
        b2 = params["b2"]

    w_i = jnp.concatenate([params["w_ir"], params["w_iz"], params["w_in"]], axis=1)
    w_h = jnp.concatenate([params["w_hr"], params["w_hz"], params["w_hn"]], axis=1)
    b_gi = jnp.concatenate([params["b_ir"] + params["b_hr"],
                            params["b_iz"] + params["b_hz"],
                            params["b_in"]], axis=1)
    b_gh = jnp.concatenate([jnp.zeros((1, 2 * H), jnp.float32), params["b_hn"]], axis=1)

    # Row layout, each section start rounded to a sublane (8-row) boundary.
    r_w1 = 0
    r_b1 = _round_up(r_w1 + E, 8)
    r_wi = r_b1 + 8
    r_wh = _round_up(r_wi + H, 8)
    r_bg = _round_up(r_wh + H, 8)
    r_w2 = r_bg + 8
    r_b2 = _round_up(r_w2 + H, 8)
    rows = r_b2 + 8

    slab = jnp.zeros((rows, lanes), jnp.float32)
    slab = slab.at[r_w1:r_w1 + E, 0:H].set(params["w1"])
    slab = slab.at[r_b1:r_b1 + 1, 0:H].set(params["b1"])
    slab = slab.at[r_wi:r_wi + H, 0:W3].set(w_i)
    slab = slab.at[r_wh:r_wh + H, 0:W3].set(w_h)
    slab = slab.at[r_bg:r_bg + 1, 0:W3].set(b_gi)
    slab = slab.at[r_bg + 1:r_bg + 2, 0:W3].set(b_gh)
    slab = slab.at[r_w2:r_w2 + H, 0:A].set(w2)
    slab = slab.at[r_b2:r_b2 + 1, 0:A].set(b2)

    layout = dict(E=E, H=H, A=A,
                  GO=_round_up(H, 128), GQ=_round_up(A, 128),
                  r_w1=r_w1, r_b1=r_b1, r_wi=r_wi, r_wh=r_wh,
                  r_bg=r_bg, r_w2=r_w2, r_b2=r_b2)
    return {"slab": slab, "layout": layout}


# ----------------------------------------------------------------------------
# Wrapper
# ----------------------------------------------------------------------------
def nrnn_agent_forward(inputs, hidden_state, packed, *, use_layer_norm=False):
    """inputs: (b, a, e) f32; hidden_state: (b, a, H) f32; packed = pack_params(...).
    Returns (q: (b, a, A), hh: (b, a, H))."""
    b, a, e = inputs.shape
    layout = packed["layout"]
    E, H, A = layout["E"], layout["H"], layout["A"]
    GO, GQ = layout["GO"], layout["GQ"]
    assert e == E
    N = b * a

    inp = inputs.reshape(N, e).astype(jnp.float32)
    h_in = hidden_state.reshape(N, H).astype(jnp.float32)
    slab = packed["slab"]

    W3 = 3 * H
    cost = pl.CostEstimate(
        flops=2 * (N * E * H + 2 * N * H * W3 + N * H * A),
        transcendentals=3 * N * H,
        bytes_accessed=4 * (inp.size + h_in.size + slab.size + N * (GO + GQ)),
    )

    kernel = functools.partial(_nrnn_kernel, layout, use_layer_norm)

    # grid=() single full-array block: the whole problem fits in one VMEM block and any
    # tiling would only add per-step overhead (holds on v5e/v6e/v7x alike).
    out = pl.pallas_call(
        kernel,
        out_shape=jax.ShapeDtypeStruct((N, GO + GQ), jnp.float32),
        grid=(),
        in_specs=[
            pl.BlockSpec(inp.shape, lambda: (0, 0)),
            pl.BlockSpec(h_in.shape, lambda: (0, 0)),
            pl.BlockSpec(slab.shape, lambda: (0, 0)),
        ],
        out_specs=pl.BlockSpec((N, GO + GQ), lambda: (0, 0)),
        cost_estimate=cost,
    )(inp, h_in, slab)

    hh = out[:, 0:H]
    q = out[:, GO:GO + A]
    return q.reshape(b, a, A), hh.reshape(b, a, H)


# ----------------------------------------------------------------------------
# Pure-JAX reference (matches the PyTorch module) + synthetic params
# ----------------------------------------------------------------------------
def nrnn_agent_reference(inputs, hidden_state, params, *, use_layer_norm=False):
    b, a, e = inputs.shape
    H = params["w1"].shape[1]
    A = params["w2"].shape[1]
    x = jnp.maximum(inputs.reshape(-1, e) @ params["w1"] + params["b1"], 0.0)
    h = hidden_state.reshape(-1, H)
    r = jax.nn.sigmoid(x @ params["w_ir"] + params["b_ir"] + h @ params["w_hr"] + params["b_hr"])
    z = jax.nn.sigmoid(x @ params["w_iz"] + params["b_iz"] + h @ params["w_hz"] + params["b_hz"])
    n = jnp.tanh(x @ params["w_in"] + params["b_in"] + r * (h @ params["w_hn"] + params["b_hn"]))
    hh = (1.0 - z) * n + z * h
    if use_layer_norm:
        mean = jnp.mean(hh, axis=-1, keepdims=True)
        cent = hh - mean
        var = jnp.mean(cent * cent, axis=-1, keepdims=True)
        y = cent * jax.lax.rsqrt(var + 1e-5) * params["ln_g"] + params["ln_b"]
    else:
        y = hh
    q = y @ params["w2"] + params["b2"]
    return q.reshape(b, a, A), hh.reshape(b, a, H)


def make_params(key, input_shape, rnn_hidden_dim, n_actions):
    """Deterministic synthetic parameters, stored as (in_features, out_features)
    (transposed relative to PyTorch's nn.Linear / nn.GRUCell layout)."""
    ks = jax.random.split(key, 18)
    H, E, A = rnn_hidden_dim, input_shape, n_actions

    def u(k, shape, fan_in):
        bound = 1.0 / jnp.sqrt(fan_in)
        return jax.random.uniform(k, shape, jnp.float32, -bound, bound)

    return {
        "w1": u(ks[0], (E, H), E), "b1": u(ks[1], (1, H), E),
        "w_ir": u(ks[2], (H, H), H), "w_iz": u(ks[3], (H, H), H), "w_in": u(ks[4], (H, H), H),
        "b_ir": u(ks[5], (1, H), H), "b_iz": u(ks[6], (1, H), H), "b_in": u(ks[7], (1, H), H),
        "w_hr": u(ks[8], (H, H), H), "w_hz": u(ks[9], (H, H), H), "w_hn": u(ks[10], (H, H), H),
        "b_hr": u(ks[11], (1, H), H), "b_hz": u(ks[12], (1, H), H), "b_hn": u(ks[13], (1, H), H),
        # Non-trivial LN affine so the fc2 fold is actually exercised.
        "ln_g": 1.0 + 0.1 * u(ks[16], (1, H), H), "ln_b": u(ks[17], (1, H), H),
        "w2": u(ks[14], (H, A), H), "b2": u(ks[15], (1, A), H),
    }


if __name__ == "__main__":
    batch, n_agents, obs_dim = 2, 4, 16
    rnn_hidden_dim, n_actions = 32, 8

    key = jax.random.PRNGKey(0)
    k_in, k_h, k_p = jax.random.split(key, 3)

    inputs = jax.random.normal(k_in, (batch, n_agents, obs_dim), jnp.float32)
    hidden = jax.random.normal(k_h, (batch, n_agents, rnn_hidden_dim), jnp.float32)
    params = make_params(k_p, obs_dim, rnn_hidden_dim, n_actions)

    for use_ln in (False, True):
        packed = pack_params(params, use_layer_norm=use_ln)
        q, hh = nrnn_agent_forward(inputs, hidden, packed, use_layer_norm=use_ln)
        jax.block_until_ready((q, hh))

        q_ref, hh_ref = nrnn_agent_reference(inputs, hidden, params, use_layer_norm=use_ln)
        assert q.shape == (batch, n_agents, n_actions)
        assert hh.shape == (batch, n_agents, rnn_hidden_dim)
        assert bool(jnp.allclose(hh, hh_ref, atol=2e-5, rtol=2e-5)), "hh mismatch"
        assert bool(jnp.allclose(q, q_ref, atol=2e-5, rtol=2e-5)), "q mismatch"

    print("KERNEL_OK")
</pallas_src>

<mosaic_0001>
module attributes {stable_mosaic.version = 11 : i64} {
  func.func @_nrnn_kernel(%arg0: memref<8x16xf32, #tpu.memory_space<vmem>>, %arg1: memref<8x32xf32, #tpu.memory_space<vmem>>, %arg2: memref<136x96xf32, #tpu.memory_space<vmem>>, %arg3: memref<8x256xf32, #tpu.memory_space<vmem>>) attributes {dimension_semantics = [], scalar_prefetch = 0 : i64, scratch_operands = 0 : i64, tpu.core_type = #tpu.core_type<tc>} {
    %c0 = arith.constant 0 : index
    %c0_0 = arith.constant 0 : index
    %0 = vector.load %arg2[%c0, %c0_0] : memref<136x96xf32, #tpu.memory_space<vmem>>, vector<16x32xf32>
    %c16 = arith.constant 16 : index
    %c0_1 = arith.constant 0 : index
    %1 = vector.load %arg2[%c16, %c0_1] : memref<136x96xf32, #tpu.memory_space<vmem>>, vector<1x32xf32>
    %c24 = arith.constant 24 : index
    %c0_2 = arith.constant 0 : index
    %2 = vector.load %arg2[%c24, %c0_2] : memref<136x96xf32, #tpu.memory_space<vmem>>, vector<32x96xf32>
    %c56 = arith.constant 56 : index
    %c0_3 = arith.constant 0 : index
    %3 = vector.load %arg2[%c56, %c0_3] : memref<136x96xf32, #tpu.memory_space<vmem>>, vector<32x96xf32>
    %c88 = arith.constant 88 : index
    %c0_4 = arith.constant 0 : index
    %4 = vector.load %arg2[%c88, %c0_4] : memref<136x96xf32, #tpu.memory_space<vmem>>, vector<2x96xf32>
    %c96 = arith.constant 96 : index
    %c0_5 = arith.constant 0 : index
    %5 = vector.load %arg2[%c96, %c0_5] : memref<136x96xf32, #tpu.memory_space<vmem>>, vector<32x8xf32>
    %c128 = arith.constant 128 : index
    %c0_6 = arith.constant 0 : index
    %6 = vector.load %arg2[%c128, %c0_6] : memref<136x96xf32, #tpu.memory_space<vmem>>, vector<1x8xf32>
    %c0_7 = arith.constant 0 : index
    %c0_8 = arith.constant 0 : index
    %7 = vector.load %arg0[%c0_7, %c0_8] : memref<8x16xf32, #tpu.memory_space<vmem>>, vector<8x16xf32>
    %cst = arith.constant dense<0.000000e+00> : vector<8x32xf32>
    %8 = tpu.matmul %7, %0, %cst {dimension_numbers = #tpu.dot_dimension_numbers<[1], [0], [0], [1], [0, 0, 1, 1], [], []>} : vector<8x16xf32>, vector<16x32xf32>, vector<8x32xf32> -> vector<8x32xf32>
    %9 = vector.broadcast %1 : vector<1x32xf32> to vector<8x32xf32>
    %10 = arith.addf %8, %9 : vector<8x32xf32>
    %cst_9 = arith.constant 0.000000e+00 : f32
    %11 = vector.broadcast %cst_9 : f32 to vector<8x32xf32>
    %12 = arith.maximumf %10, %11 : vector<8x32xf32>
    %c0_10 = arith.constant 0 : index
    %c0_11 = arith.constant 0 : index
    %13 = vector.load %arg1[%c0_10, %c0_11] : memref<8x32xf32, #tpu.memory_space<vmem>>, vector<8x32xf32>
    %cst_12 = arith.constant dense<0.000000e+00> : vector<8x96xf32>
    %14 = tpu.matmul %12, %2, %cst_12 {dimension_numbers = #tpu.dot_dimension_numbers<[1], [0], [0], [1], [0, 0, 1, 1], [], []>} : vector<8x32xf32>, vector<32x96xf32>, vector<8x96xf32> -> vector<8x96xf32>
    %15 = vector.extract_strided_slice %4 {offsets = [0, 0], sizes = [1, 96], strides = [1, 1]} : vector<2x96xf32> to vector<1x96xf32>
    %16 = vector.broadcast %15 : vector<1x96xf32> to vector<8x96xf32>
    %17 = arith.addf %14, %16 : vector<8x96xf32>
    %cst_13 = arith.constant dense<0.000000e+00> : vector<8x96xf32>
    %18 = tpu.matmul %13, %3, %cst_13 {dimension_numbers = #tpu.dot_dimension_numbers<[1], [0], [0], [1], [0, 0, 1, 1], [], []>} : vector<8x32xf32>, vector<32x96xf32>, vector<8x96xf32> -> vector<8x96xf32>
    %19 = vector.extract_strided_slice %4 {offsets = [1, 0], sizes = [1, 96], strides = [1, 1]} : vector<2x96xf32> to vector<1x96xf32>
    %20 = vector.broadcast %19 : vector<1x96xf32> to vector<8x96xf32>
    %21 = arith.addf %18, %20 : vector<8x96xf32>
    %22 = vector.extract_strided_slice %17 {offsets = [0, 0], sizes = [8, 32], strides = [1, 1]} : vector<8x96xf32> to vector<8x32xf32>
    %23 = vector.extract_strided_slice %21 {offsets = [0, 0], sizes = [8, 32], strides = [1, 1]} : vector<8x96xf32> to vector<8x32xf32>
    %24 = arith.addf %22, %23 : vector<8x32xf32>
    %25 = arith.negf %24 : vector<8x32xf32>
    %26 = math.exp %25 : vector<8x32xf32>
    %cst_14 = arith.constant 1.000000e+00 : f32
    %27 = vector.broadcast %cst_14 : f32 to vector<8x32xf32>
    %28 = arith.addf %27, %26 : vector<8x32xf32>
    %29 = arith.divf %27, %28 : vector<8x32xf32>
    %30 = vector.extract_strided_slice %17 {offsets = [0, 32], sizes = [8, 32], strides = [1, 1]} : vector<8x96xf32> to vector<8x32xf32>
    %31 = vector.extract_strided_slice %21 {offsets = [0, 32], sizes = [8, 32], strides = [1, 1]} : vector<8x96xf32> to vector<8x32xf32>
    %32 = arith.addf %30, %31 : vector<8x32xf32>
    %33 = arith.negf %32 : vector<8x32xf32>
    %34 = math.exp %33 : vector<8x32xf32>
    %cst_15 = arith.constant 1.000000e+00 : f32
    %35 = vector.broadcast %cst_15 : f32 to vector<8x32xf32>
    %36 = arith.addf %35, %34 : vector<8x32xf32>
    %37 = arith.divf %35, %36 : vector<8x32xf32>
    %38 = vector.extract_strided_slice %17 {offsets = [0, 64], sizes = [8, 32], strides = [1, 1]} : vector<8x96xf32> to vector<8x32xf32>
    %39 = vector.extract_strided_slice %21 {offsets = [0, 64], sizes = [8, 32], strides = [1, 1]} : vector<8x96xf32> to vector<8x32xf32>
    %40 = arith.mulf %29, %39 : vector<8x32xf32>
    %41 = arith.addf %38, %40 : vector<8x32xf32>
    %42 = math.tanh %41 : vector<8x32xf32>
    %cst_16 = arith.constant 1.000000e+00 : f32
    %43 = vector.broadcast %cst_16 : f32 to vector<8x32xf32>
    %44 = arith.subf %43, %37 : vector<8x32xf32>
    %45 = arith.mulf %44, %42 : vector<8x32xf32>
    %46 = arith.mulf %37, %13 : vector<8x32xf32>
    %47 = arith.addf %45, %46 : vector<8x32xf32>
    %cst_17 = arith.constant dense<0.000000e+00> : vector<8x8xf32>
    %48 = tpu.matmul %47, %5, %cst_17 {dimension_numbers = #tpu.dot_dimension_numbers<[1], [0], [0], [1], [0, 0, 1, 1], [], []>} : vector<8x32xf32>, vector<32x8xf32>, vector<8x8xf32> -> vector<8x8xf32>
    %49 = vector.broadcast %6 : vector<1x8xf32> to vector<8x8xf32>
    %50 = arith.addf %48, %49 : vector<8x8xf32>
    %c0_i32 = arith.constant 0 : i32
    %51 = arith.sitofp %c0_i32 : i32 to f32
    %52 = vector.broadcast %51 : f32 to vector<8x96xf32>
    %53 = tpu.concatenate %47, %52 in 1 : vector<8x32xf32>, vector<8x96xf32> -> vector<8x128xf32>
    %c0_18 = arith.constant 0 : index
    %c0_19 = arith.constant 0 : index
    %54 = vector.load %arg3[%c0_18, %c0_19] : memref<8x256xf32, #tpu.memory_space<vmem>>, vector<8x128xf32>
    tpu.vector_store %arg3[%c0_18, %c0_19], %53 {strides = array<i32>} : memref<8x256xf32, #tpu.memory_space<vmem>>, vector<8x128xf32>,
    %c0_i32_20 = arith.constant 0 : i32
    %55 = arith.sitofp %c0_i32_20 : i32 to f32
    %56 = vector.broadcast %55 : f32 to vector<8x120xf32>
    %57 = tpu.concatenate %50, %56 in 1 : vector<8x8xf32>, vector<8x120xf32> -> vector<8x128xf32>
    %c0_21 = arith.constant 0 : index
    %c128_22 = arith.constant 128 : index
    %58 = vector.load %arg3[%c0_21, %c128_22] : memref<8x256xf32, #tpu.memory_space<vmem>>, vector<8x128xf32>
    tpu.vector_store %arg3[%c0_21, %c128_22], %57 {strides = array<i32>} : memref<8x256xf32, #tpu.memory_space<vmem>>, vector<8x128xf32>,
    return
  }
}

</mosaic_0001>

<llo_original>
// kernel: tpu_custom_call.1
$region0: #{tpu_custom_call.1}
  #allocation0 [shape = 'u32[]', space=smem, size = 0x4, offset = 0x4, fixed_abs, tag = 'smem constant byte address 0x4 - core index']
  #allocation1 [shape = 'u32[144,128]{1,0:T(1,128)}', space=vmem, size = 0x12000, scoped, tag = 'internal scratch']
  %s0 = inlined_call_operand.hbm [shape: f32[8,16], index: 0, kind: input, shape index: {}]
  %s1 = inlined_call_operand.hbm [shape: f32[8,32], index: 1, kind: input, shape index: {}]
  %s2 = inlined_call_operand.hbm [shape: f32[136,96], index: 2, kind: input, shape index: {}]
  %s3 = inlined_call_operand.hbm [shape: f32[8,256], index: 3, kind: output, shape index: {}]
  %s4 = sld [smem:[#allocation0]]
  $region34: #{tpu_custom_call.1} parent=0
    _
  %s6 = ssub.s32 1, %s4
  %s7 = scalar_select 0, %s6, %s4
  $region1: #{tpu_custom_call.1} parent=0
    #allocation2 [shape = 'u8[4096]{0}', space=vmem, size = 0x1000, scoped, tag = 'input window, operand 0, single buffered']
    #allocation3 [shape = 's32[1]{0}', space=sflag, size = 0x4, scoped, tag = 'scoped memory for tpu_custom_call.1']
    #allocation4 [shape = 's32[1]{0}', space=sflag, size = 0x4, scoped, tag = 'scoped memory for tpu_custom_call.1']
    #allocation5 [shape = 'u8[4096]{0}', space=vmem, size = 0x1000, scoped, tag = 'input window, operand 1, single buffered']
    #allocation6 [shape = 's32[1]{0}', space=sflag, size = 0x4, scoped, tag = 'scoped memory for tpu_custom_call.1']
    #allocation7 [shape = 'u8[69632]{0}', space=vmem, size = 0x11000, scoped, tag = 'input window, operand 2, single buffered']
    #allocation8 [shape = 'u8[8192]{0}', space=vmem, size = 0x2000, scoped, tag = 'output window, operand 0, single buffered']
    %8 = vsyncpa [#allocation3], 0
    %9 = vsyncpa [#allocation6], 0
    %10 = vsyncpa [#allocation4], 0
    // Predicated region
    $region2: #{tpu_custom_call.1} parent=1 // pred_check
      _
    $region3: #{tpu_custom_call.1} parent=1 // pred_check_branch
      %12 = sbr.rel (0) target = $region5
    $region4: #{tpu_custom_call.1} parent=1 // pred_region
      %s14 = ssub.s32 128, 128
      %15 = vsyncadd [#allocation3], %s14
      %s17 = sshll.u32 [#allocation2], 4
      %s18 = int_to_ptr.vmem [resolvable:$true] %s17
      %20 = dma.hbm_to_vmem [thread:$0]  %s0, 128, %s18, [#allocation3]
    $region5: #{tpu_custom_call.1} parent=1 // pred_fallthru
      _
    // Predicated region
    $region6: #{tpu_custom_call.1} parent=1 // pred_check
      _
    $region7: #{tpu_custom_call.1} parent=1 // pred_check_branch
      %22 = sbr.rel (0) target = $region9
    $region8: #{tpu_custom_call.1} parent=1 // pred_region
      %s24 = ssub.s32 128, 128
      %25 = vsyncadd [#allocation6], %s24
      %s27 = sshll.u32 [#allocation5], 4
      %s28 = int_to_ptr.vmem [resolvable:$true] %s27
      %30 = dma.hbm_to_vmem [thread:$0]  %s1, 128, %s28, [#allocation6]
    $region9: #{tpu_custom_call.1} parent=1 // pred_fallthru
      _
    // Predicated region
    $region10: #{tpu_custom_call.1} parent=1 // pred_check
      _
    $region11: #{tpu_custom_call.1} parent=1 // pred_check_branch
      %32 = sbr.rel (0) target = $region13
    $region12: #{tpu_custom_call.1} parent=1 // pred_region
      %s34 = ssub.s32 2176, 2176
      %35 = vsyncadd [#allocation6], %s34
      %s36 = sshll.u32 [#allocation7], 4
      %s37 = int_to_ptr.vmem [resolvable:$true] %s36
      %42 = dma.hbm_to_vmem [thread:$0]  %s2, 2176, %s37, [#allocation6], 128, 128, 8
    $region13: #{tpu_custom_call.1} parent=1 // pred_fallthru
      _
    // Predicated region
    $region14: #{tpu_custom_call.1} parent=1 // pred_check
      _
    $region15: #{tpu_custom_call.1} parent=1 // pred_check_branch
      %44 = sbr.rel (0) target = $region17
    $region16: #{tpu_custom_call.1} parent=1 // pred_region
      %45 = dma.done [#allocation3], 128
    $region17: #{tpu_custom_call.1} parent=1 // pred_fallthru
      _
    // Predicated region
    $region18: #{tpu_custom_call.1} parent=1 // pred_check
      _
    $region19: #{tpu_custom_call.1} parent=1 // pred_check_branch
      %47 = sbr.rel (0) target = $region21
    $region20: #{tpu_custom_call.1} parent=1 // pred_region
      %48 = dma.done [#allocation6], 128
    $region21: #{tpu_custom_call.1} parent=1 // pred_fallthru
      _
    // Predicated region
    $region22: #{tpu_custom_call.1} parent=1 // pred_check
      _
    $region23: #{tpu_custom_call.1} parent=1 // pred_check_branch
      %50 = sbr.rel (0) target = $region25
    $region24: #{tpu_custom_call.1} parent=1 // pred_region
      %51 = dma.done [#allocation6], 2176
    $region25: #{tpu_custom_call.1} parent=1 // pred_fallthru
      _
    %v52 = vld [vmem:[#allocation7] sm:$0xff]
    %v53 = vld [vmem:[#allocation7 + $0x8] sm:$0xff]
    %v54 = vld [vmem:[#allocation7 + $0x10] sm:$0x1]
    %v55 = vld [vmem:[#allocation7 + $0x18] sm:$0xff]
    %v56 = vld [vmem:[#allocation7 + $0x20] sm:$0xff]
    %v57 = vld [vmem:[#allocation7 + $0x28] sm:$0xff]
    %v58 = vld [vmem:[#allocation7 + $0x30] sm:$0xff]
    %v59 = vld [vmem:[#allocation7 + $0x38] sm:$0xff]
    %v60 = vld [vmem:[#allocation7 + $0x40] sm:$0xff]
    %v61 = vld [vmem:[#allocation7 + $0x48] sm:$0xff]
    %v62 = vld [vmem:[#allocation7 + $0x50] sm:$0xff]
    %v63 = vld [vmem:[#allocation7 + $0x58] sm:$0x3]
    %v64 = vld [vmem:[#allocation7 + $0x60] sm:$0xff]
    %v65 = vld [vmem:[#allocation7 + $0x68] sm:$0xff]
    %v66 = vld [vmem:[#allocation7 + $0x70] sm:$0xff]
    %v67 = vld [vmem:[#allocation7 + $0x78] sm:$0xff]
    %v68 = vld [vmem:[#allocation7 + $0x80] sm:$0x1]
    %v69 = vld [vmem:[#allocation2] sm:$0xff]
    %v70 = vlaneseq
    %v71 = vshrl.u32 %v70, 7
    %v72 = vsub.s32 0, %v71
    %v73 = vrot.slane %v54, %v72
    %vm74 = vcmask 130048
    %v76 = vsel %vm74, %v69, 0
    %78 = vmatprep.subr.mxu0 0.0
    %79 = vmatpush1.msra.mxu0 0.0
    %80 = vmatprep.subr.mxu0 0.0
    %81 = vmatpush1.msra.mxu0 0.0
    %82 = vmatprep.subr.mxu0 0.0
    %83 = vmatpush1.msra.mxu0 0.0
    %84 = vmatprep.subr.mxu0 0.0
    %85 = vmatpush1.msra.mxu0 0.0
    %86 = vmatprep.subr.mxu0 0.0
    %87 = vmatpush1.msra.mxu0 0.0
    %88 = vmatprep.subr.mxu0 0.0
    %89 = vmatpush1.msra.mxu0 0.0
    %90 = vmatprep.subr.mxu0 0.0
    %91 = vmatpush1.msra.mxu0 0.0
    %92 = vmatprep.subr.mxu0 0.0
    %93 = vmatpush1.msra.mxu0 0.0
    %94 = vmatprep.subr.mxu0 0.0
    %95 = vmatpush1.msra.mxu0 0.0
    %96 = vmatprep.subr.mxu0 0.0
    %97 = vmatpush1.msra.mxu0 0.0
    %98 = vmatprep.subr.mxu0 0.0
    %99 = vmatpush1.msra.mxu0 0.0
    %100 = vmatprep.subr.mxu0 0.0
    %101 = vmatpush1.msra.mxu0 0.0
    %102 = vmatprep.subr.mxu0 0.0
    %103 = vmatpush1.msra.mxu0 0.0
    %104 = vmatprep.subr.mxu0 0.0
    %105 = vmatpush1.msra.mxu0 0.0
    %106 = vmatprep.subr.mxu0 0.0
    %107 = vmatpush1.msra.mxu0 %v53
    %108 = vmatprep.subr.mxu0 0.0
    %109 = vmatpush1.msra.mxu0 %v52
    %110 = vmatprep.subr.mxu0 0.0
    %111 = vmatpush2.msra.mxu0 0.0
    %112 = vmatprep.subr.mxu0 0.0
    %113 = vmatpush2.msra.mxu0 0.0
    %114 = vmatprep.subr.mxu0 0.0
    %115 = vmatpush2.msra.mxu0 0.0
    %116 = vmatprep.subr.mxu0 0.0
    %117 = vmatpush2.msra.mxu0 0.0
    %118 = vmatprep.subr.mxu0 0.0
    %119 = vmatpush2.msra.mxu0 0.0
    %120 = vmatprep.subr.mxu0 0.0
    %121 = vmatpush2.msra.mxu0 0.0
    %122 = vmatprep.subr.mxu0 0.0
    %123 = vmatpush2.msra.mxu0 0.0
    %124 = vmatprep.subr.mxu0 0.0
    %125 = vmatpush2.msra.mxu0 0.0
    %126 = vmatprep.subr.mxu0 0.0
    %127 = vmatpush2.msra.mxu0 0.0
    %128 = vmatprep.subr.mxu0 0.0
    %129 = vmatpush2.msra.mxu0 0.0
    %130 = vmatprep.subr.mxu0 0.0
    %131 = vmatpush2.msra.mxu0 0.0
    %132 = vmatprep.subr.mxu0 0.0
    %133 = vmatpush2.msra.mxu0 0.0
    %134 = vmatprep.subr.mxu0 0.0
    %135 = vmatpush2.msra.mxu0 0.0
    %136 = vmatprep.subr.mxu0 0.0
    %137 = vmatpush2.msra.mxu0 0.0
    %138 = vmatprep.subr.mxu0 0.0
    %139 = vmatpush2.msra.mxu0 0.0
    %140 = vmatprep.subr.mxu0 0.0
    %141 = vmatpush2.msra.mxu0 0.0
    %142 = vmatprep.mubr.f32.mxu0 0.0
    %143 = vmatmul.mubr.f32.gmra.mxu0 %v76
    %v144 = vpop.f32.mrf.mxu0
    %v145 = vadd.f32 %v73, %v144
    %v146 = vpop.f32.mrf.mxu0
    %147 = vdwg.mxu0
    %v148 = vmax.f32 %v145, 0.0
    %v149 = vld [vmem:[#allocation5] sm:$0xff]
    %v150 = vlaneseq
    %v151 = vshrl.u32 %v150, 7
    %v152 = vsub.s32 0, %v151
    %v153 = vrot.slane %v63, %v152
    %vm154 = vcmask 261120
    %v156 = vsel %vm154, %v148, 0
    %158 = vmatprep.subr.mxu0 0.0
    %159 = vmatpush1.msra.mxu0 0.0
    %160 = vmatprep.subr.mxu0 0.0
    %161 = vmatpush1.msra.mxu0 0.0
    %162 = vmatprep.subr.mxu0 0.0
    %163 = vmatpush1.msra.mxu0 0.0
    %164 = vmatprep.subr.mxu0 0.0
    %165 = vmatpush1.msra.mxu0 0.0
    %166 = vmatprep.subr.mxu0 0.0
    %167 = vmatpush1.msra.mxu0 0.0
    %168 = vmatprep.subr.mxu0 0.0
    %169 = vmatpush1.msra.mxu0 0.0
    %170 = vmatprep.subr.mxu0 0.0
    %171 = vmatpush1.msra.mxu0 0.0
    %172 = vmatprep.subr.mxu0 0.0
    %173 = vmatpush1.msra.mxu0 0.0
    %174 = vmatprep.subr.mxu0 0.0
    %175 = vmatpush1.msra.mxu0 0.0
    %176 = vmatprep.subr.mxu0 0.0
    %177 = vmatpush1.msra.mxu0 0.0
    %178 = vmatprep.subr.mxu0 0.0
    %179 = vmatpush1.msra.mxu0 0.0
    %180 = vmatprep.subr.mxu0 0.0
    %181 = vmatpush1.msra.mxu0 0.0
    %182 = vmatprep.subr.mxu0 0.0
    %183 = vmatpush1.msra.mxu0 %v58
    %184 = vmatprep.subr.mxu0 0.0
    %185 = vmatpush1.msra.mxu0 %v57
    %186 = vmatprep.subr.mxu0 0.0
    %187 = vmatpush1.msra.mxu0 %v56
    %188 = vmatprep.subr.mxu0 0.0
    %189 = vmatpush1.msra.mxu0 %v55
    %190 = vmatprep.subr.mxu0 0.0
    %191 = vmatpush2.msra.mxu0 0.0
    %192 = vmatprep.subr.mxu0 0.0
    %193 = vmatpush2.msra.mxu0 0.0
    %194 = vmatprep.subr.mxu0 0.0
    %195 = vmatpush2.msra.mxu0 0.0
    %196 = vmatprep.subr.mxu0 0.0
    %197 = vmatpush2.msra.mxu0 0.0
    %198 = vmatprep.subr.mxu0 0.0
    %199 = vmatpush2.msra.mxu0 0.0
    %200 = vmatprep.subr.mxu0 0.0
    %201 = vmatpush2.msra.mxu0 0.0
    %202 = vmatprep.subr.mxu0 0.0
    %203 = vmatpush2.msra.mxu0 0.0
    %204 = vmatprep.subr.mxu0 0.0
    %205 = vmatpush2.msra.mxu0 0.0
    %206 = vmatprep.subr.mxu0 0.0
    %207 = vmatpush2.msra.mxu0 0.0
    %208 = vmatprep.subr.mxu0 0.0
    %209 = vmatpush2.msra.mxu0 0.0
    %210 = vmatprep.subr.mxu0 0.0
    %211 = vmatpush2.msra.mxu0 0.0
    %212 = vmatprep.subr.mxu0 0.0
    %213 = vmatpush2.msra.mxu0 0.0
    %214 = vmatprep.subr.mxu0 0.0
    %215 = vmatpush2.msra.mxu0 0.0
    %216 = vmatprep.subr.mxu0 0.0
    %217 = vmatpush2.msra.mxu0 0.0
    %218 = vmatprep.subr.mxu0 0.0
    %219 = vmatpush2.msra.mxu0 0.0
    %220 = vmatprep.subr.mxu0 0.0
    %221 = vmatpush2.msra.mxu0 0.0
    %222 = vmatprep.mubr.f32.mxu0 0.0
    %223 = vmatmul.mubr.f32.gmra.mxu0 %v156
    %v224 = vpop.f32.mrf.mxu0
    %v225 = vadd.f32 %v153, %v224
    %v226 = vpop.f32.mrf.mxu0
    %227 = vdwg.mxu0
    %v228 = vlaneseq
    %v229 = vshrl.u32 %v228, 7
    %v230 = vsub.s32 1, %v229
    %v231 = vrot.slane %v63, %v230
    %v233 = vsel %vm154, %v149, 0
    %235 = vmatprep.subr.mxu0 0.0
    %236 = vmatpush1.msra.mxu0 0.0
    %237 = vmatprep.subr.mxu0 0.0
    %238 = vmatpush1.msra.mxu0 0.0
    %239 = vmatprep.subr.mxu0 0.0
    %240 = vmatpush1.msra.mxu0 0.0
    %241 = vmatprep.subr.mxu0 0.0
    %242 = vmatpush1.msra.mxu0 0.0
    %243 = vmatprep.subr.mxu0 0.0
    %244 = vmatpush1.msra.mxu0 0.0
    %245 = vmatprep.subr.mxu0 0.0
    %246 = vmatpush1.msra.mxu0 0.0
    %247 = vmatprep.subr.mxu0 0.0
    %248 = vmatpush1.msra.mxu0 0.0
    %249 = vmatprep.subr.mxu0 0.0
    %250 = vmatpush1.msra.mxu0 0.0
    %251 = vmatprep.subr.mxu0 0.0
    %252 = vmatpush1.msra.mxu0 0.0
    %253 = vmatprep.subr.mxu0 0.0
    %254 = vmatpush1.msra.mxu0 0.0
    %255 = vmatprep.subr.mxu0 0.0
    %256 = vmatpush1.msra.mxu0 0.0
    %257 = vmatprep.subr.mxu0 0.0
    %258 = vmatpush1.msra.mxu0 0.0
    %259 = vmatprep.subr.mxu0 0.0
    %260 = vmatpush1.msra.mxu0 %v62
    %261 = vmatprep.subr.mxu0 0.0
    %262 = vmatpush1.msra.mxu0 %v61
    %263 = vmatprep.subr.mxu0 0.0
    %264 = vmatpush1.msra.mxu0 %v60
    %265 = vmatprep.subr.mxu0 0.0
    %266 = vmatpush1.msra.mxu0 %v59
    %267 = vmatprep.subr.mxu0 0.0
    %268 = vmatpush2.msra.mxu0 0.0
    %269 = vmatprep.subr.mxu0 0.0
    %270 = vmatpush2.msra.mxu0 0.0
    %271 = vmatprep.subr.mxu0 0.0
    %272 = vmatpush2.msra.mxu0 0.0
    %273 = vmatprep.subr.mxu0 0.0
    %274 = vmatpush2.msra.mxu0 0.0
    %275 = vmatprep.subr.mxu0 0.0
    %276 = vmatpush2.msra.mxu0 0.0
    %277 = vmatprep.subr.mxu0 0.0
    %278 = vmatpush2.msra.mxu0 0.0
    %279 = vmatprep.subr.mxu0 0.0
    %280 = vmatpush2.msra.mxu0 0.0
    %281 = vmatprep.subr.mxu0 0.0
    %282 = vmatpush2.msra.mxu0 0.0
    %283 = vmatprep.subr.mxu0 0.0
    %284 = vmatpush2.msra.mxu0 0.0
    %285 = vmatprep.subr.mxu0 0.0
    %286 = vmatpush2.msra.mxu0 0.0
    %287 = vmatprep.subr.mxu0 0.0
    %288 = vmatpush2.msra.mxu0 0.0
    %289 = vmatprep.subr.mxu0 0.0
    %290 = vmatpush2.msra.mxu0 0.0
    %291 = vmatprep.subr.mxu0 0.0
    %292 = vmatpush2.msra.mxu0 0.0
    %293 = vmatprep.subr.mxu0 0.0
    %294 = vmatpush2.msra.mxu0 0.0
    %295 = vmatprep.subr.mxu0 0.0
    %296 = vmatpush2.msra.mxu0 0.0
    %297 = vmatprep.subr.mxu0 0.0
    %298 = vmatpush2.msra.mxu0 0.0
    %299 = vmatprep.mubr.f32.mxu0 0.0
    %300 = vmatmul.mubr.f32.gmra.mxu0 %v233
    %v301 = vpop.f32.mrf.mxu0
    %v302 = vadd.f32 %v231, %v301
    %v303 = vpop.f32.mrf.mxu0
    %304 = vdwg.mxu0
    %v305 = vadd.f32 %v225, %v302
    %v306 = vxor.u32 %v305, 2147483648
    %v307 = vmul.f32 %v306, 1.442695
    %v308 = vpow.pop %v307
    %v309 = vadd.f32 %v308, 1.0
    %v310 = vrcp.pop %v309
    %v311 = vmul.f32 1.0, %v310
    %313 = vrot.lane.b32.xlu0 %v302, 64
    %v314 = vpop.permute.xlu0 %313
    %v316 = vmul.f32 %v311, %v314
    %318 = vrot.lane.b32.xlu0 %v316, 64
    %v319 = vpop.permute.xlu0 %318
    %v321 = vadd.f32 %v225, %v319
    %v322 = vtanh.pop %v321
    %v323 = vsub.f32 1.0, %v311
    %325 = vrot.lane.b32.xlu0 %v322, 96
    %v326 = vpop.permute.xlu0 %325
    %v328 = vmul.f32 %v323, %v326
    %329 = vrot.lane.b32.xlu0 %v149, 32
    %v330 = vpop.permute.xlu0 %329
    %v332 = vmul.f32 %v311, %v330
    %v333 = vadd.f32 %v328, %v332
    %v334 = vlaneseq
    %v335 = vshrl.u32 %v334, 7
    %v336 = vsub.s32 0, %v335
    %v337 = vrot.slane %v68, %v336
    %339 = vrot.lane.b32.xlu0 %v333, 96
    %v340 = vpop.permute.xlu0 %339
    %v341 = vsel %vm154, %v340, 0
    %343 = vmatprep.subr.mxu0 0.0
    %344 = vmatpush1.msra.mxu0 0.0
    %345 = vmatprep.subr.mxu0 0.0
    %346 = vmatpush1.msra.mxu0 0.0
    %347 = vmatprep.subr.mxu0 0.0
    %348 = vmatpush1.msra.mxu0 0.0
    %349 = vmatprep.subr.mxu0 0.0
    %350 = vmatpush1.msra.mxu0 0.0
    %351 = vmatprep.subr.mxu0 0.0
    %352 = vmatpush1.msra.mxu0 0.0
    %353 = vmatprep.subr.mxu0 0.0
    %354 = vmatpush1.msra.mxu0 0.0
    %355 = vmatprep.subr.mxu0 0.0
    %356 = vmatpush1.msra.mxu0 0.0
    %357 = vmatprep.subr.mxu0 0.0
    %358 = vmatpush1.msra.mxu0 0.0
    %359 = vmatprep.subr.mxu0 0.0
    %360 = vmatpush1.msra.mxu0 0.0
    %361 = vmatprep.subr.mxu0 0.0
    %362 = vmatpush1.msra.mxu0 0.0
    %363 = vmatprep.subr.mxu0 0.0
    %364 = vmatpush1.msra.mxu0 0.0
    %365 = vmatprep.subr.mxu0 0.0
    %366 = vmatpush1.msra.mxu0 0.0
    %367 = vmatprep.subr.mxu0 0.0
    %368 = vmatpush1.msra.mxu0 %v67
    %369 = vmatprep.subr.mxu0 0.0
    %370 = vmatpush1.msra.mxu0 %v66
    %371 = vmatprep.subr.mxu0 0.0
    %372 = vmatpush1.msra.mxu0 %v65
    %373 = vmatprep.subr.mxu0 0.0
    %374 = vmatpush1.msra.mxu0 %v64
    %375 = vmatprep.subr.mxu0 0.0
    %376 = vmatpush2.msra.mxu0 0.0
    %377 = vmatprep.subr.mxu0 0.0
    %378 = vmatpush2.msra.mxu0 0.0
    %379 = vmatprep.subr.mxu0 0.0
    %380 = vmatpush2.msra.mxu0 0.0
    %381 = vmatprep.subr.mxu0 0.0
    %382 = vmatpush2.msra.mxu0 0.0
    %383 = vmatprep.subr.mxu0 0.0
    %384 = vmatpush2.msra.mxu0 0.0
    %385 = vmatprep.subr.mxu0 0.0
    %386 = vmatpush2.msra.mxu0 0.0
    %387 = vmatprep.subr.mxu0 0.0
    %388 = vmatpush2.msra.mxu0 0.0
    %389 = vmatprep.subr.mxu0 0.0
    %390 = vmatpush2.msra.mxu0 0.0
    %391 = vmatprep.subr.mxu0 0.0
    %392 = vmatpush2.msra.mxu0 0.0
    %393 = vmatprep.subr.mxu0 0.0
    %394 = vmatpush2.msra.mxu0 0.0
    %395 = vmatprep.subr.mxu0 0.0
    %396 = vmatpush2.msra.mxu0 0.0
    %397 = vmatprep.subr.mxu0 0.0
    %398 = vmatpush2.msra.mxu0 0.0
    %399 = vmatprep.subr.mxu0 0.0
    %400 = vmatpush2.msra.mxu0 0.0
    %401 = vmatprep.subr.mxu0 0.0
    %402 = vmatpush2.msra.mxu0 0.0
    %403 = vmatprep.subr.mxu0 0.0
    %404 = vmatpush2.msra.mxu0 0.0
    %405 = vmatprep.subr.mxu0 0.0
    %406 = vmatpush2.msra.mxu0 0.0
    %407 = vmatprep.mubr.f32.mxu0 0.0
    %408 = vmatmul.mubr.f32.gmra.mxu0 %v341
    %v409 = vpop.f32.mrf.mxu0
    %v410 = vadd.f32 %v337, %v409
    %v411 = vpop.f32.mrf.mxu0
    %412 = vdwg.mxu0
    %v414 = vsel %vm154, %v340, 0.0
    %415 = vst [vmem:[#allocation8] sm:$0xff] %v414
    %vm416 = vcmask 64512
    %v417 = vsel %vm416, %v410, 0.0
    %418 = vst [vmem:[#allocation8 + $0x8] sm:$0xff] %v417
    // Predicated region
    $region26: #{tpu_custom_call.1} parent=1 // pred_check
      _
    $region27: #{tpu_custom_call.1} parent=1 // pred_check_branch
      %420 = sbr.rel (0) target = $region29
    $region28: #{tpu_custom_call.1} parent=1 // pred_region
      %s422 = ssub.s32 256, 256
      %423 = vsyncadd [#allocation4], %s422
      %s425 = sshll.u32 [#allocation8], 4
      %s426 = int_to_ptr.vmem [resolvable:$true] %s425
      %428 = dma.vmem_to_hbm [thread:$0]  %s426, 256, %s3, [#allocation4]
    $region29: #{tpu_custom_call.1} parent=1 // pred_fallthru
      _
    // Predicated region
    $region30: #{tpu_custom_call.1} parent=1 // pred_check
      _
    $region31: #{tpu_custom_call.1} parent=1 // pred_check_branch
      %430 = sbr.rel (0) target = $region33
    $region32: #{tpu_custom_call.1} parent=1 // pred_region
      %431 = dma.done [#allocation4], 256
    $region33: #{tpu_custom_call.1} parent=1 // pred_fallthru
      _
    %432 = vsyncpa [#allocation3], 1
    %433 = vsyncpa [#allocation6], 1
    %434 = vsyncpa [#allocation4], 1

</llo_original>
